<compile_context>
chip_gen: v5e
topology: v5e:2x2
jax: 0.10.0
libtpu: 0.0.40
codegen_flags: <defaults>
</compile_context>

<pallas_src>
import functools
import math

import jax
import jax.numpy as jnp
from jax.experimental import pallas as pl
from jax.experimental.pallas import tpu as pltpu

MAX_SEQ_LEN = 64


# ---------------------------------------------------------------------------
# Parameter (buffer) construction -- deterministic, mirrors __init__ exactly.
# ---------------------------------------------------------------------------
def make_pos_embedding(emb_size: int, maxlen: int = MAX_SEQ_LEN) -> jnp.ndarray:
    den = jnp.exp(
        -jnp.arange(0, emb_size, 2, dtype=jnp.float32) * (math.log(10000.0) / emb_size)
    )
    pos = jnp.arange(0, maxlen, dtype=jnp.float32).reshape(maxlen, 1)
    pe = jnp.zeros((maxlen, emb_size), dtype=jnp.float32)
    pe = pe.at[:, 0::2].set(jnp.sin(pos * den))
    pe = pe.at[:, 1::2].set(jnp.cos(pos * den))
    return pe[None, :, :]  # (1, maxlen, emb_size)


# ---------------------------------------------------------------------------
# Pallas kernels (operate on flattened (rows, S*E) tiles)
# ---------------------------------------------------------------------------
def _add_pe_kernel(x_ref, pe_ref, o_ref):
    # x_ref: (Bt, S*E); pe_ref: (1, S*E) broadcast over the batch-tile rows.
    o_ref[...] = (x_ref[...] + pe_ref[...]).astype(o_ref.dtype)


def _add_pe_dropout_kernel(x_ref, pe_ref, r_ref, o_ref, *, rate: float):
    # Inverted dropout: keep where uniform >= rate (P(keep) = 1 - rate).
    y = x_ref[...].astype(jnp.float32) + pe_ref[...].astype(jnp.float32)
    keep = r_ref[...] >= jnp.float32(rate)
    scale = jnp.float32(1.0 / (1.0 - rate))
    o_ref[...] = jnp.where(keep, y * scale, jnp.float32(0.0)).astype(o_ref.dtype)


# ---------------------------------------------------------------------------
# Wrapper
# ---------------------------------------------------------------------------
def _pick_batch_tile(batch: int, row_bytes: int,
                     target_bytes: int = 2 * 1024 * 1024) -> int:
    """Pick a batch-row tile: ~target_bytes per tile, multiple of 8 (or full B)."""
    rows = max(1, target_bytes // max(1, row_bytes))
    if batch <= rows:
        return batch            # full extent -> always a legal block dim
    return max(8, (rows // 8) * 8)


def positional_encoding_forward(
    x: jnp.ndarray,
    pos_embedding: jnp.ndarray,
    *,
    dropout_rate: float = 0.1,
    training: bool = False,
    rng_key=None,
) -> jnp.ndarray:
    """x: (B, S, E); pos_embedding: (1, maxlen, E) float32."""
    B, S, E = x.shape
    maxlen = pos_embedding.shape[1]
    flat = S * E

    # Lane-dense flattening: last block dim becomes S*E.
    x2 = x.reshape(B, flat)

    # Slice the PE buffer to the first S rows via the BlockSpec when legal
    # (flattened block last dim must be a multiple of 128 or the full extent);
    # otherwise do a tiny wrapper-side slice.
    if flat % 128 == 0 or S == maxlen:
        pe2 = pos_embedding.reshape(1, maxlen * E)
    else:
        pe2 = jax.lax.slice_in_dim(pos_embedding, 0, S, axis=1).reshape(1, flat)
    pe2 = pe2.astype(jnp.float32)

    bt = _pick_batch_tile(B, flat * x.dtype.itemsize)
    grid = (pl.cdiv(B, bt),)

    xo_spec = pl.BlockSpec((bt, flat), lambda b: (b, 0))
    pe_spec = pl.BlockSpec((1, flat), lambda b: (0, 0))
    out_shape = jax.ShapeDtypeStruct((B, flat), x.dtype)
    cparams = pltpu.CompilerParams(
        dimension_semantics=("parallel",),
        vmem_limit_bytes=32 * 1024 * 1024,
    )

    if (not training) or dropout_rate == 0.0:
        out2 = pl.pallas_call(
            _add_pe_kernel,
            out_shape=out_shape,
            grid=grid,
            in_specs=[xo_spec, pe_spec],
            out_specs=xo_spec,
            compiler_params=cparams,
        )(x2, pe2)
        return out2.reshape(B, S, E)

    if dropout_rate >= 1.0:          # degenerate p=1 case: everything dropped
        return jnp.zeros_like(x)

    if rng_key is None:
        rng_key = jax.random.PRNGKey(0)
    rand = jax.random.uniform(rng_key, (B, flat), dtype=jnp.float32)

    kernel = functools.partial(_add_pe_dropout_kernel, rate=float(dropout_rate))
    out2 = pl.pallas_call(
        kernel,
        out_shape=out_shape,
        grid=grid,
        in_specs=[xo_spec, pe_spec, xo_spec],
        out_specs=xo_spec,
        compiler_params=cparams,
    )(x2, pe2, rand)
    return out2.reshape(B, S, E)


# ---------------------------------------------------------------------------
# Demo / self-check
# ---------------------------------------------------------------------------
if __name__ == "__main__":
    B, S, E = 2, 8, 32
    dropout_rate = 0.1

    key = jax.random.PRNGKey(0)
    k_x, k_drop = jax.random.split(key)
    x = jax.random.normal(k_x, (B, S, E), dtype=jnp.float32)
    pos_embedding = make_pos_embedding(E, MAX_SEQ_LEN)

    # --- eval mode (dropout == identity): exact numerical check -------------
    out_eval = positional_encoding_forward(
        x, pos_embedding, dropout_rate=dropout_rate, training=False
    )
    out_eval = jax.block_until_ready(out_eval)
    ref = x + pos_embedding[:, :S, :]
    assert out_eval.shape == (B, S, E) and out_eval.dtype == jnp.float32
    assert jnp.allclose(out_eval, ref, atol=1e-6, rtol=1e-6), "eval mismatch"

    # --- training mode (dropout): structural check ---------------------------
    out_train = positional_encoding_forward(
        x, pos_embedding, dropout_rate=dropout_rate, training=True, rng_key=k_drop
    )
    out_train = jax.block_until_ready(out_train)
    assert out_train.shape == (B, S, E)
    # Every element must be either dropped (0) or the scaled eval output.
    scaled = ref / (1.0 - dropout_rate)
    is_zero = jnp.isclose(out_train, 0.0, atol=1e-6)
    is_scaled = jnp.isclose(out_train, scaled, atol=1e-5, rtol=1e-5)
    assert bool(jnp.all(is_zero | is_scaled)), "train dropout structure mismatch"

    print("KERNEL_OK")
</pallas_src>

<mosaic_0001>
module attributes {stable_mosaic.version = 11 : i64} {
  func.func @_add_pe_kernel(%arg0: i32, %arg1: memref<2x256xf32, #tpu.memory_space<vmem>>, %arg2: memref<1x256xf32, #tpu.memory_space<vmem>>, %arg3: memref<2x256xf32, #tpu.memory_space<vmem>>) attributes {dimension_semantics = [#tpu.dimension_semantics<parallel>], iteration_bounds = array<i64: 1>, scalar_prefetch = 0 : i64, scratch_operands = 0 : i64, tpu.core_type = #tpu.core_type<tc>, window_params = [{transform_indices = @transform_0, window_bounds = array<i64: 2, 256>}, {transform_indices = @transform_1, window_bounds = array<i64: 1, 256>}, {transform_indices = @transform_2, window_bounds = array<i64: 2, 256>}]} {
    %c0 = arith.constant 0 : index
    %c0_0 = arith.constant 0 : index
    %0 = vector.load %arg1[%c0, %c0_0] : memref<2x256xf32, #tpu.memory_space<vmem>>, vector<2x256xf32>
    %c0_1 = arith.constant 0 : index
    %c0_2 = arith.constant 0 : index
    %1 = vector.load %arg2[%c0_1, %c0_2] : memref<1x256xf32, #tpu.memory_space<vmem>>, vector<1x256xf32>
    %2 = vector.broadcast %1 : vector<1x256xf32> to vector<2x256xf32>
    %3 = arith.addf %0, %2 : vector<2x256xf32>
    %c0_3 = arith.constant 0 : index
    %c0_4 = arith.constant 0 : index
    %4 = vector.load %arg3[%c0_3, %c0_4] : memref<2x256xf32, #tpu.memory_space<vmem>>, vector<2x256xf32>
    tpu.vector_store %arg3[%c0_3, %c0_4], %3 {strides = array<i32>} : memref<2x256xf32, #tpu.memory_space<vmem>>, vector<2x256xf32>,
    return
  }
  func.func @transform_0(%arg0: i32) -> (i32, i32) {
    %c0_i32 = arith.constant 0 : i32
    %c0_i32_0 = arith.constant 0 : i32
    return %arg0, %c0_i32 : i32, i32
  }
  func.func @transform_1(%arg0: i32) -> (i32, i32) {
    %c0_i32 = arith.constant 0 : i32
    %c0_i32_0 = arith.constant 0 : i32
    %c0_i32_1 = arith.constant 0 : i32
    return %c0_i32, %c0_i32_0 : i32, i32
  }
  func.func @transform_2(%arg0: i32) -> (i32, i32) {
    %c0_i32 = arith.constant 0 : i32
    %c0_i32_0 = arith.constant 0 : i32
    return %arg0, %c0_i32 : i32, i32
  }
}

</mosaic_0001>

<llo_original>
// kernel: tpu_custom_call.1
$region0: #{tpu_custom_call.1}
  #allocation0 [shape = 'u32[]', space=smem, size = 0x4, offset = 0x4, fixed_abs, tag = 'smem constant byte address 0x4 - core index']
  #allocation1 [shape = 'u32[72,128]{1,0:T(1,128)}', space=vmem, size = 0x9000, scoped, tag = 'internal scratch']
  %s0 = inlined_call_operand.hbm [shape: f32[2,256], index: 0, kind: input, shape index: {}]
  %s1 = inlined_call_operand.hbm [shape: f32[1,2048], index: 1, kind: input, shape index: {}]
  %s2 = inlined_call_operand.hbm [shape: f32[2,256], index: 2, kind: output, shape index: {}]
  %s3 = sld [smem:[#allocation0]]
  $region26: #{tpu_custom_call.1} parent=0
    _
  %s5 = ssub.s32 1, %s3
  %s6 = scalar_select 0, %s5, %s3
  $region1: #{tpu_custom_call.1} parent=0
    #allocation2 [shape = 'u8[2048]{0}', space=vmem, size = 0x800, scoped, tag = 'input window, operand 0, single buffered']
    #allocation3 [shape = 's32[1]{0}', space=sflag, size = 0x4, scoped, tag = 'scoped memory for tpu_custom_call.1']
    #allocation4 [shape = 's32[1]{0}', space=sflag, size = 0x4, scoped, tag = 'scoped memory for tpu_custom_call.1']
    #allocation5 [shape = 'u8[1024]{0}', space=vmem, size = 0x400, scoped, tag = 'input window, operand 1, single buffered']
    #allocation6 [shape = 's32[1]{0}', space=sflag, size = 0x4, scoped, tag = 'scoped memory for tpu_custom_call.1']
    #allocation7 [shape = 'u8[2048]{0}', space=vmem, size = 0x800, scoped, tag = 'output window, operand 0, single buffered']
    %7 = vsyncpa [#allocation3], 0
    %8 = vsyncpa [#allocation6], 0
    %9 = vsyncpa [#allocation4], 0
    // Predicated region
    $region2: #{tpu_custom_call.1} parent=1 // pred_check
      _
    $region3: #{tpu_custom_call.1} parent=1 // pred_check_branch
      %11 = sbr.rel (0) target = $region5
    $region4: #{tpu_custom_call.1} parent=1 // pred_region
      %13 = vsyncadd [#allocation3], 0
      %s15 = sshll.u32 %s0, 4
      %s16 = int_to_ptr.hbm [resolvable:$true] %s15
      %s17 = sshll.u32 [#allocation2], 4
      %s18 = int_to_ptr.vmem [resolvable:$true] %s17
      %20 = dma.hbm_to_vmem [thread:$0]  %s16, 64, %s18, [#allocation3]
    $region5: #{tpu_custom_call.1} parent=1 // pred_fallthru
      _
    // Predicated region
    $region6: #{tpu_custom_call.1} parent=1 // pred_check
      _
    $region7: #{tpu_custom_call.1} parent=1 // pred_check_branch
      %22 = sbr.rel (0) target = $region9
    $region8: #{tpu_custom_call.1} parent=1 // pred_region
      %24 = vsyncadd [#allocation6], 0
      %s26 = sshll.u32 %s1, 4
      %s27 = int_to_ptr.hbm [resolvable:$true] %s26
      %s28 = sshll.u32 [#allocation5], 4
      %s29 = int_to_ptr.vmem [resolvable:$true] %s28
      %31 = dma.hbm_to_vmem [thread:$0]  %s27, 32, %s29, [#allocation6]
    $region9: #{tpu_custom_call.1} parent=1 // pred_fallthru
      _
    // Predicated region
    $region10: #{tpu_custom_call.1} parent=1 // pred_check
      _
    $region11: #{tpu_custom_call.1} parent=1 // pred_check_branch
      %33 = sbr.rel (0) target = $region13
    $region12: #{tpu_custom_call.1} parent=1 // pred_region
      %35 = dma.done [#allocation3], 64
    $region13: #{tpu_custom_call.1} parent=1 // pred_fallthru
      _
    // Predicated region
    $region14: #{tpu_custom_call.1} parent=1 // pred_check
      _
    $region15: #{tpu_custom_call.1} parent=1 // pred_check_branch
      %37 = sbr.rel (0) target = $region17
    $region16: #{tpu_custom_call.1} parent=1 // pred_region
      %39 = dma.done [#allocation6], 32
    $region17: #{tpu_custom_call.1} parent=1 // pred_fallthru
      _
    %v40 = vld [vmem:[#allocation2] sm:$0xf]
    %v41 = vld [vmem:[#allocation5] sm:$0x3]
    %v43 = vperm.slane %v41, 0
    %v44 = vperm.slane %v41, 1
    %v45 = vrot.slane %v44, 6
    %vm46 = vcmask 1041408
    %v47 = vsel %vm46, %v43, %v45
    %v49 = vadd.f32 %v40, %v47
    %50 = vst [vmem:[#allocation7] sm:$0xf] %v49
    // Predicated region
    $region18: #{tpu_custom_call.1} parent=1 // pred_check
      _
    $region19: #{tpu_custom_call.1} parent=1 // pred_check_branch
      %52 = sbr.rel (0) target = $region21
    $region20: #{tpu_custom_call.1} parent=1 // pred_region
      %54 = vsyncadd [#allocation4], 0
      %s56 = sshll.u32 [#allocation7], 4
      %s57 = int_to_ptr.vmem [resolvable:$true] %s56
      %s58 = sshll.u32 %s2, 4
      %s59 = int_to_ptr.hbm [resolvable:$true] %s58
      %61 = dma.vmem_to_hbm [thread:$0]  %s57, 64, %s59, [#allocation4]
    $region21: #{tpu_custom_call.1} parent=1 // pred_fallthru
      _
    // Predicated region
    $region22: #{tpu_custom_call.1} parent=1 // pred_check
      _
    $region23: #{tpu_custom_call.1} parent=1 // pred_check_branch
      %63 = sbr.rel (0) target = $region25
    $region24: #{tpu_custom_call.1} parent=1 // pred_region
      %65 = dma.done [#allocation4], 64
    $region25: #{tpu_custom_call.1} parent=1 // pred_fallthru
      _
    %66 = vsyncpa [#allocation3], 1
    %67 = vsyncpa [#allocation6], 1
    %68 = vsyncpa [#allocation4], 1

</llo_original>
